<compile_context>
chip_gen: v5e
topology: v5e:2x2
jax: 0.10.0
libtpu: 0.0.40
codegen_flags: <defaults>
</compile_context>

<pallas_src>
import jax
import jax.numpy as jnp
from jax.experimental import pallas as pl
from jax.experimental.pallas import tpu as pltpu


def _round_up(x: int, m: int) -> int:
    return ((x + m - 1) // m) * m


def _cdiv(a: int, b: int) -> int:
    return (a + b - 1) // b


def _is_single_tc_chip() -> bool:
    """True for 1-TensorCore-per-chip parts (v5e / v6e)."""
    try:
        kind = jax.devices()[0].device_kind.lower()
    except Exception:
        return False
    return ("v5e" in kind) or ("v6e" in kind) or ("lite" in kind)


def _choose_tile_b(batch: int, n_classes: int) -> int:
    """Batch-tile rows: ~2 MiB of f32 logits per buffer, MXU aligned."""
    row_bytes = _round_up(n_classes, 128) * 4
    tile = max(256, (2 << 20) // row_bytes)
    tile = min(_round_up(tile, 256), 2048)
    if batch <= tile:
        # Single full-batch block: block dims equal the array dims, which is
        # always a legal block shape regardless of (8,128) divisibility.
        return batch
    return tile


def _make_ols_kernel(tile_b: int, batch: int, accumulate: bool, mask_rows: bool):
    def kernel(y_h_ref, y_ref, sup_hi_ref, sup_lo_ref, out_ref):
        t = pl.program_id(0)
        logits = y_h_ref[...]             # (tb, C) f32
        labels = y_ref[...]               # (tb, 1) i32
        tb, c = logits.shape

        # log_softmax along the class (lane) axis.
        m = jnp.max(logits, axis=-1, keepdims=True)
        shifted = logits - m
        lse = jnp.log(jnp.sum(jnp.exp(shifted), axis=-1, keepdims=True))
        log_p = shifted - lse             # (tb, C)

        # one-hot(y); exact in bf16 (values are 0/1).
        cls_ids = jax.lax.broadcasted_iota(jnp.int32, (tb, c), 1)
        onehot = (cls_ids == labels).astype(jnp.bfloat16)

        # true_dist[i, c] = sup_blend[c, y[i]] = sup_blend_T[y[i], c]
        # computed on the MXU as onehot @ sup_blend_T; the bf16 hi/lo split
        # keeps ~2^-18 relative accuracy without the f32-emulated matmul path.
        true_dist = jnp.dot(onehot, sup_hi_ref[...],
                            preferred_element_type=jnp.float32)
        true_dist = true_dist + jnp.dot(onehot, sup_lo_ref[...],
                                        preferred_element_type=jnp.float32)

        # Chained lane-then-sublane reduce: (tb,C) -> (tb,1) -> (1,1).
        per_row = jnp.sum(true_dist * log_p, axis=-1, keepdims=True)
        if mask_rows:
            # Last batch tile may be partial; zero rows past the real batch
            # (their block contents are undefined).
            row_ids = jax.lax.broadcasted_iota(jnp.int32, (tb, 1), 0)
            per_row = jnp.where(t * tile_b + row_ids < batch, per_row, 0.0)
        partial = -jnp.sum(per_row, axis=0, keepdims=True)    # (1, 1)

        # Lane-dense (8,128) block: partial at [0,0], zeros elsewhere.
        r = jax.lax.broadcasted_iota(jnp.int32, (8, 128), 0)
        l = jax.lax.broadcasted_iota(jnp.int32, (8, 128), 1)
        blk = jnp.where((r == 0) & (l == 0), partial, 0.0)

        if accumulate:
            @pl.when(t == 0)
            def _init():
                out_ref[...] = jnp.zeros_like(out_ref)
            out_ref[...] += blk
        else:
            out_ref[...] = blk

    return kernel


def online_label_smoothing_loss(y_h, y, supervise, alpha: float):
    """Forward pass of OnlineLabelSmoothing (eval-mode semantics).

    y_h:        [B, C] float logits
    y:          [B]    int labels
    supervise:  [C, C] float soft-target matrix (columns are class targets)
    returns scalar float32 loss == alpha*hard_CE + (1-alpha)*soft_loss
    """
    B, C = y_h.shape
    y_h = y_h.astype(jnp.float32)
    supervise = supervise.astype(jnp.float32)

    # Fold alpha into the (transposed) supervise matrix: hard CE becomes a
    # gather of eye(C), so one gather->multiply->reduce epilogue covers both
    # terms.  The transpose lives in the wrapper (tiny XLA op), never in the
    # kernel.
    sup_t = (1.0 - alpha) * supervise.T + alpha * jnp.eye(C, dtype=jnp.float32)
    # hi/lo bf16 split: sup_t ~= hi + lo with ~2^-18 relative residual.
    sup_t_hi = sup_t.astype(jnp.bfloat16)
    sup_t_lo = (sup_t - sup_t_hi.astype(jnp.float32)).astype(jnp.bfloat16)

    tile_b = _choose_tile_b(B, C)
    n_tiles = _cdiv(B, tile_b)
    mask_rows = (B % tile_b) != 0

    single_tc = _is_single_tc_chip()
    parallel_out = (not single_tc) and n_tiles > 1
    accumulate = not parallel_out

    y2 = y.astype(jnp.int32).reshape(B, 1)

    # Single-buffer the resident supervise inputs once they are big enough to
    # matter (constant index_map => double buffering buys nothing).
    if C >= 512:
        sup_spec = pl.BlockSpec((C, C), lambda t: (0, 0),
                                pipeline_mode=pl.Buffered(1))
        sup_buffers = 1
    else:
        sup_spec = pl.BlockSpec((C, C), lambda t: (0, 0))
        sup_buffers = 2

    # Explicit VMEM budget: pipeline buffers + headroom for kernel temporaries.
    c_lanes = _round_up(C, 128)
    rows = _round_up(tile_b, 8)
    logits_blk = rows * c_lanes * 4
    label_blk = rows * 128 * 4                      # (tb,1) i32 lane-pads to 128
    sup_blk = _round_up(C, 16) * c_lanes * 2        # bf16
    out_blk = 8 * 128 * 4
    pipeline_bytes = (2 * logits_blk + 2 * label_blk
                      + 2 * sup_buffers * sup_blk + 2 * out_blk)
    vmem_limit = int(min(64 << 20,
                         max(32 << 20, pipeline_bytes + 6 * logits_blk + (2 << 20))))

    if parallel_out:
        out_shape = jax.ShapeDtypeStruct((n_tiles * 8, 128), jnp.float32)
        out_spec = pl.BlockSpec((8, 128), lambda t: (t, 0))
        semantics = ("parallel",)
    else:
        out_shape = jax.ShapeDtypeStruct((8, 128), jnp.float32)
        out_spec = pl.BlockSpec((8, 128), lambda t: (0, 0))
        semantics = ("arbitrary",)

    kernel = _make_ols_kernel(tile_b, B, accumulate, mask_rows)

    partials = pl.pallas_call(
        kernel,
        out_shape=out_shape,
        grid=(n_tiles,),
        in_specs=[
            pl.BlockSpec((tile_b, C), lambda t: (t, 0)),   # logits stream
            pl.BlockSpec((tile_b, 1), lambda t: (t, 0)),   # labels
            sup_spec,                                      # resident sup_T (hi)
            sup_spec,                                      # resident sup_T (lo)
        ],
        out_specs=out_spec,
        compiler_params=pltpu.CompilerParams(
            dimension_semantics=semantics,
            vmem_limit_bytes=vmem_limit),
    )(y_h, y2, sup_t_hi, sup_t_lo)

    # Each tile contributes one nonzero at [0,0] of its (or the accumulated)
    # (8,128) block; the tiny final reduce happens here.
    return jnp.sum(partials) / B


def _reference_loss(y_h, y, supervise, alpha):
    """Plain-JAX reference mirroring the PyTorch forward (eval mode)."""
    log_p = jax.nn.log_softmax(y_h, axis=-1)
    true_dist = supervise[:, y].swapaxes(-1, -2)              # (B, C)
    soft = jnp.mean(jnp.sum(-true_dist * log_p, axis=-1))
    hard = jnp.mean(-jnp.take_along_axis(log_p, y[:, None], axis=-1)[:, 0])
    return alpha * hard + (1.0 - alpha) * soft


if __name__ == "__main__":
    ALPHA = 0.5
    SMOOTHING = 0.1
    N_CLASSES = 16
    BATCH = 8

    # Deterministic buffer init, exactly as in __init__:
    # off-diagonal = smoothing / (C - 1), diagonal = 1 - smoothing.
    off = SMOOTHING / (N_CLASSES - 1)
    supervise = jnp.full((N_CLASSES, N_CLASSES), off, dtype=jnp.float32)
    supervise = supervise.at[jnp.arange(N_CLASSES), jnp.arange(N_CLASSES)].set(
        1.0 - SMOOTHING)

    key = jax.random.PRNGKey(0)
    k1, k2 = jax.random.split(key)
    y_h = jax.random.normal(k1, (BATCH, N_CLASSES), dtype=jnp.float32)
    y = jax.random.randint(k2, (BATCH,), 0, N_CLASSES, dtype=jnp.int32)

    loss = online_label_smoothing_loss(y_h, y, supervise, ALPHA)
    loss = jax.block_until_ready(loss)

    ref = _reference_loss(y_h, y, supervise, ALPHA)
    # Tolerance covers the ~2^-18 relative residual of the bf16 hi/lo split.
    assert jnp.allclose(loss, ref, rtol=2e-5, atol=2e-5), (loss, ref)

    print("KERNEL_OK")
</pallas_src>

<mosaic_0001>
module attributes {stable_mosaic.version = 11 : i64} {
  func.func @kernel(%arg0: i32, %arg1: memref<8x16xf32, #tpu.memory_space<vmem>>, %arg2: memref<8x1xi32, #tpu.memory_space<vmem>>, %arg3: memref<16x16xbf16, #tpu.memory_space<vmem>>, %arg4: memref<16x16xbf16, #tpu.memory_space<vmem>>, %arg5: memref<8x128xf32, #tpu.memory_space<vmem>>) attributes {dimension_semantics = [#tpu.dimension_semantics<arbitrary>], iteration_bounds = array<i64: 1>, scalar_prefetch = 0 : i64, scratch_operands = 0 : i64, tpu.core_type = #tpu.core_type<tc>, window_params = [{transform_indices = @transform_0, window_bounds = array<i64: 8, 16>}, {transform_indices = @transform_1, window_bounds = array<i64: 8, 1>}, {pipeline_mode = #tpu.pipeline_mode<synchronous>, transform_indices = @transform_2, window_bounds = array<i64: 16, 16>}, {pipeline_mode = #tpu.pipeline_mode<synchronous>, transform_indices = @transform_3, window_bounds = array<i64: 16, 16>}, {pipeline_mode = #tpu.pipeline_mode<synchronous>, transform_indices = @transform_4, window_bounds = array<i64: 8, 128>}]} {
    %c0 = arith.constant 0 : index
    %c0_0 = arith.constant 0 : index
    %0 = vector.load %arg1[%c0, %c0_0] : memref<8x16xf32, #tpu.memory_space<vmem>>, vector<8x16xf32>
    %c0_1 = arith.constant 0 : index
    %c0_2 = arith.constant 0 : index
    %1 = vector.load %arg2[%c0_1, %c0_2] : memref<8x1xi32, #tpu.memory_space<vmem>>, vector<8x1xi32>
    %cst = arith.constant dense<0xFF800000> : vector<8xf32>
    %2 = vector.multi_reduction <maximumf>, %0, %cst [1] : vector<8x16xf32> to vector<8xf32>
    %3 = vector.shape_cast %2 : vector<8xf32> to vector<8x1xf32>
    %4 = vector.broadcast %3 : vector<8x1xf32> to vector<8x16xf32>
    %5 = arith.subf %0, %4 : vector<8x16xf32>
    %6 = math.exp %5 : vector<8x16xf32>
    %cst_3 = arith.constant dense<0.000000e+00> : vector<8xf32>
    %7 = vector.multi_reduction <add>, %6, %cst_3 [1] : vector<8x16xf32> to vector<8xf32>
    %8 = vector.shape_cast %7 : vector<8xf32> to vector<8x1xf32>
    %9 = math.log %8 : vector<8x1xf32>
    %10 = vector.broadcast %9 : vector<8x1xf32> to vector<8x16xf32>
    %11 = arith.subf %5, %10 : vector<8x16xf32>
    %12 = tpu.iota {dimensions = array<i32: 1>} : vector<8x16xi32>
    %13 = vector.broadcast %1 : vector<8x1xi32> to vector<8x16xi32>
    %14 = arith.cmpi eq, %12, %13 : vector<8x16xi32>
    %15 = arith.extui %14 : vector<8x16xi1> to vector<8x16xi32>
    %16 = arith.sitofp %15 : vector<8x16xi32> to vector<8x16xf32>
    %17 = arith.truncf %16 : vector<8x16xf32> to vector<8x16xbf16>
    %c0_4 = arith.constant 0 : index
    %c0_5 = arith.constant 0 : index
    %18 = vector.load %arg3[%c0_4, %c0_5] : memref<16x16xbf16, #tpu.memory_space<vmem>>, vector<16x16xbf16>
    %cst_6 = arith.constant dense<0.000000e+00> : vector<8x16xf32>
    %19 = tpu.matmul %17, %18, %cst_6 {dimension_numbers = #tpu.dot_dimension_numbers<[1], [0], [0], [1], [0, 0, 1, 1], [], []>} : vector<8x16xbf16>, vector<16x16xbf16>, vector<8x16xf32> -> vector<8x16xf32>
    %c0_7 = arith.constant 0 : index
    %c0_8 = arith.constant 0 : index
    %20 = vector.load %arg4[%c0_7, %c0_8] : memref<16x16xbf16, #tpu.memory_space<vmem>>, vector<16x16xbf16>
    %cst_9 = arith.constant dense<0.000000e+00> : vector<8x16xf32>
    %21 = tpu.matmul %17, %20, %cst_9 {dimension_numbers = #tpu.dot_dimension_numbers<[1], [0], [0], [1], [0, 0, 1, 1], [], []>} : vector<8x16xbf16>, vector<16x16xbf16>, vector<8x16xf32> -> vector<8x16xf32>
    %22 = arith.addf %19, %21 : vector<8x16xf32>
    %23 = arith.mulf %22, %11 : vector<8x16xf32>
    %cst_10 = arith.constant dense<0.000000e+00> : vector<8xf32>
    %24 = vector.multi_reduction <add>, %23, %cst_10 [1] : vector<8x16xf32> to vector<8xf32>
    %25 = vector.shape_cast %24 : vector<8xf32> to vector<8x1xf32>
    %cst_11 = arith.constant dense<0.000000e+00> : vector<1xf32>
    %26 = vector.multi_reduction <add>, %25, %cst_11 [0] : vector<8x1xf32> to vector<1xf32>
    %27 = vector.shape_cast %26 : vector<1xf32> to vector<1x1xf32>
    %cst_12 = arith.constant 0.000000e+00 : f32
    %28 = vector.broadcast %cst_12 : f32 to vector<1x1xf32>
    %29 = arith.subf %28, %27 : vector<1x1xf32>
    %30 = tpu.iota {dimensions = array<i32: 0>} : vector<8x128xi32>
    %31 = tpu.iota {dimensions = array<i32: 1>} : vector<8x128xi32>
    %c0_i32 = arith.constant 0 : i32
    %32 = vector.broadcast %c0_i32 : i32 to vector<8x128xi32>
    %33 = arith.cmpi eq, %30, %32 : vector<8x128xi32>
    %c0_i32_13 = arith.constant 0 : i32
    %34 = vector.broadcast %c0_i32_13 : i32 to vector<8x128xi32>
    %35 = arith.cmpi eq, %31, %34 : vector<8x128xi32>
    %36 = arith.andi %33, %35 : vector<8x128xi1>
    %cst_14 = arith.constant 0.000000e+00 : f32
    %37 = vector.shape_cast %29 : vector<1x1xf32> to vector<1x1xf32>
    %38 = vector.broadcast %37 : vector<1x1xf32> to vector<8x128xf32>
    %39 = vector.broadcast %cst_14 : f32 to vector<8x128xf32>
    %40 = arith.select %36, %38, %39 : vector<8x128xi1>, vector<8x128xf32>
    %c0_i32_15 = arith.constant 0 : i32
    %41 = arith.cmpi eq, %arg0, %c0_i32_15 : i32
    %42 = arith.extui %41 : i1 to i32
    %c0_i32_16 = arith.constant 0 : i32
    %43 = arith.cmpi ne, %42, %c0_i32_16 : i32
    scf.if %43 {
      %cst_21 = arith.constant 0.000000e+00 : f32
      %47 = vector.broadcast %cst_21 : f32 to vector<8x128xf32>
      %c0_22 = arith.constant 0 : index
      %c0_23 = arith.constant 0 : index
      %48 = vector.load %arg5[%c0_22, %c0_23] : memref<8x128xf32, #tpu.memory_space<vmem>>, vector<8x128xf32>
      tpu.vector_store %arg5[%c0_22, %c0_23], %47 {strides = array<i32>} : memref<8x128xf32, #tpu.memory_space<vmem>>, vector<8x128xf32>,
    } else {
    }
    %c0_17 = arith.constant 0 : index
    %c0_18 = arith.constant 0 : index
    %44 = vector.load %arg5[%c0_17, %c0_18] : memref<8x128xf32, #tpu.memory_space<vmem>>, vector<8x128xf32>
    %45 = arith.addf %44, %40 : vector<8x128xf32>
    %c0_19 = arith.constant 0 : index
    %c0_20 = arith.constant 0 : index
    %46 = vector.load %arg5[%c0_19, %c0_20] : memref<8x128xf32, #tpu.memory_space<vmem>>, vector<8x128xf32>
    tpu.vector_store %arg5[%c0_19, %c0_20], %45 {strides = array<i32>} : memref<8x128xf32, #tpu.memory_space<vmem>>, vector<8x128xf32>,
    return
  }
  func.func @transform_0(%arg0: i32) -> (i32, i32) {
    %c0_i32 = arith.constant 0 : i32
    %c0_i32_0 = arith.constant 0 : i32
    return %arg0, %c0_i32 : i32, i32
  }
  func.func @transform_1(%arg0: i32) -> (i32, i32) {
    %c0_i32 = arith.constant 0 : i32
    %c0_i32_0 = arith.constant 0 : i32
    return %arg0, %c0_i32 : i32, i32
  }
  func.func @transform_2(%arg0: i32) -> (i32, i32) {
    %c0_i32 = arith.constant 0 : i32
    %c0_i32_0 = arith.constant 0 : i32
    %c0_i32_1 = arith.constant 0 : i32
    return %c0_i32, %c0_i32_0 : i32, i32
  }
  func.func @transform_3(%arg0: i32) -> (i32, i32) {
    %c0_i32 = arith.constant 0 : i32
    %c0_i32_0 = arith.constant 0 : i32
    %c0_i32_1 = arith.constant 0 : i32
    return %c0_i32, %c0_i32_0 : i32, i32
  }
  func.func @transform_4(%arg0: i32) -> (i32, i32) {
    %c0_i32 = arith.constant 0 : i32
    %c0_i32_0 = arith.constant 0 : i32
    %c0_i32_1 = arith.constant 0 : i32
    return %c0_i32, %c0_i32_0 : i32, i32
  }
}

</mosaic_0001>

<llo_original>
// kernel: tpu_custom_call.1
$region0: #{tpu_custom_call.1}
  #allocation0 [shape = 'u32[]', space=smem, size = 0x4, offset = 0x4, fixed_abs, tag = 'smem constant byte address 0x4 - core index']
  #allocation1 [shape = 'u32[72,128]{1,0:T(1,128)}', space=vmem, size = 0x9000, scoped, tag = 'internal scratch']
  %s0 = inlined_call_operand.vmem [shape: f32[8,16], index: 0, kind: input, shape index: {}]
  %s1 = inlined_call_operand.vmem [shape: s32[8,1], index: 1, kind: input, shape index: {}]
  %s2 = inlined_call_operand.hbm [shape: bf16[16,16], index: 2, kind: input, shape index: {}]
  %s3 = inlined_call_operand.hbm [shape: bf16[16,16], index: 3, kind: input, shape index: {}]
  %s4 = inlined_call_operand.hbm [shape: f32[8,128], index: 4, kind: output, shape index: {}]
  %s5 = sld [smem:[#allocation0]]
  $region38: #{tpu_custom_call.1} parent=0
    _
  %s7 = ssub.s32 1, %s5
  %s8 = scalar_select 0, %s7, %s5
  $region1: #{tpu_custom_call.1} parent=0
    #allocation2 [shape = 'u8[4096]{0}', space=vmem, size = 0x1000, scoped, tag = 'input window, operand 2, single buffered']
    #allocation3 [shape = 's32[1]{0}', space=sflag, size = 0x4, scoped, tag = 'scoped memory for tpu_custom_call.1']
    #allocation4 [shape = 's32[1]{0}', space=sflag, size = 0x4, scoped, tag = 'scoped memory for tpu_custom_call.1']
    #allocation5 [shape = 'u8[4096]{0}', space=vmem, size = 0x1000, scoped, tag = 'input window, operand 3, single buffered']
    #allocation6 [shape = 's32[1]{0}', space=sflag, size = 0x4, scoped, tag = 'scoped memory for tpu_custom_call.1']
    #allocation7 [shape = 'u8[4096]{0}', space=vmem, size = 0x1000, scoped, tag = 'output window, operand 0, single buffered']
    %9 = vsyncpa [#allocation3], 0
    %10 = vsyncpa [#allocation6], 0
    %11 = vsyncpa [#allocation4], 0
    // Predicated region
    $region2: #{tpu_custom_call.1} parent=1 // pred_check
      _
    $region3: #{tpu_custom_call.1} parent=1 // pred_check_branch
      %13 = sbr.rel (0) target = $region5
    $region4: #{tpu_custom_call.1} parent=1 // pred_region
      _
    $region5: #{tpu_custom_call.1} parent=1 // pred_fallthru
      _
    // Predicated region
    $region6: #{tpu_custom_call.1} parent=1 // pred_check
      _
    $region7: #{tpu_custom_call.1} parent=1 // pred_check_branch
      %15 = sbr.rel (0) target = $region9
    $region8: #{tpu_custom_call.1} parent=1 // pred_region
      _
    $region9: #{tpu_custom_call.1} parent=1 // pred_fallthru
      _
    // Predicated region
    $region10: #{tpu_custom_call.1} parent=1 // pred_check
      _
    $region11: #{tpu_custom_call.1} parent=1 // pred_check_branch
      %17 = sbr.rel (0) target = $region13
    $region12: #{tpu_custom_call.1} parent=1 // pred_region
      %19 = vsyncadd [#allocation3], 0
      %s20 = sshll.u32 %s2, 4
      %s21 = int_to_ptr.hbm [resolvable:$true] %s20
      %s22 = sshll.u32 [#allocation2], 4
      %s23 = int_to_ptr.vmem [resolvable:$true] %s22
      %28 = dma.hbm_to_vmem [thread:$0]  %s21, 128, %s23, [#allocation3], 64, 64, 4
    $region13: #{tpu_custom_call.1} parent=1 // pred_fallthru
      _
    // Predicated region
    $region14: #{tpu_custom_call.1} parent=1 // pred_check
      _
    $region15: #{tpu_custom_call.1} parent=1 // pred_check_branch
      %30 = sbr.rel (0) target = $region17
    $region16: #{tpu_custom_call.1} parent=1 // pred_region
      %32 = vsyncadd [#allocation6], 0
      %s33 = sshll.u32 %s3, 4
      %s34 = int_to_ptr.hbm [resolvable:$true] %s33
      %s35 = sshll.u32 [#allocation5], 4
      %s36 = int_to_ptr.vmem [resolvable:$true] %s35
      %41 = dma.hbm_to_vmem [thread:$0]  %s34, 128, %s36, [#allocation6], 64, 64, 4
    $region17: #{tpu_custom_call.1} parent=1 // pred_fallthru
      _
    // Predicated region
    $region18: #{tpu_custom_call.1} parent=1 // pred_check
      _
    $region19: #{tpu_custom_call.1} parent=1 // pred_check_branch
      %43 = sbr.rel (0) target = $region21
    $region20: #{tpu_custom_call.1} parent=1 // pred_region
      %45 = dma.done [#allocation3], 128
    $region21: #{tpu_custom_call.1} parent=1 // pred_fallthru
      _
    // Predicated region
    $region22: #{tpu_custom_call.1} parent=1 // pred_check
      _
    $region23: #{tpu_custom_call.1} parent=1 // pred_check_branch
      %47 = sbr.rel (0) target = $region25
    $region24: #{tpu_custom_call.1} parent=1 // pred_region
      %49 = dma.done [#allocation6], 128
    $region25: #{tpu_custom_call.1} parent=1 // pred_fallthru
      _
    %v51 = vld [vmem:[%s0] sm:$0xff]
    %v52 = vld [vmem:[%s1] sm:$0xff]
    %vm53 = vcmask 130048
    %v54 = vsel %vm53, %v51, -inf
    %55 = vmax.xlane.f32.xlu0 %v54
    %v56 = vpop.xlane.xlu0 %55
    %v57 = vsub.f32 %v51, %v56
    %v58 = vmul.f32 %v57, 1.442695
    %v59 = vpow.pop %v58
    %v60 = vsel %vm53, %v59, 0.0
    %61 = vadd.xlane.f32.xlu0 %v60
    %v62 = vpop.xlane.xlu0 %61
    %v63 = vlog2.pop %v62
    %v64 = vmul.f32 %v63, 0.6931472
    %v65 = vsub.f32 %v57, %v64
    %v66 = vlaneseq
    %v67 = vand.u32 %v66, 127
    %68 = vset.pattern.permute.xlu0 0
    %69 = vperm.xlu0 %68, %v52
    %v70 = vpop.permute.xlu0 %69
    %vm71 = vcmp.eq.s32.totalorder %v67, %v70
    %v72 = vsel %vm71, 1, 0
    %v73 = vcvt.s32.f32 %v72
    %v74 = vpack.c.bf16 %v73, %v73
    %v75 = vld [vmem:[#allocation2] sm:$0xf]
    %v76 = vld [vmem:[#allocation2 + $0x4] sm:$0xf]
    %v77 = vld [vmem:[#allocation5] sm:$0xf]
    %v78 = vld [vmem:[#allocation5 + $0x4] sm:$0xf]
    %v81 = vunpack.c.l.b16 %v77
    %v82 = vunpack.c.l.b16 %v78
    %v83 = vpack.c.b16 %v82, %v81
    %v86 = vsel %vm53, %v74, 0
    %88 = vmatpush.bf16.msra.mxu0 0
    %89 = vmatpush.bf16.msra.mxu0 0
    %90 = vmatpush.bf16.msra.mxu0 0
    %91 = vmatpush.bf16.msra.mxu0 0
    %92 = vmatpush.bf16.msra.mxu0 0
    %93 = vmatpush.bf16.msra.mxu0 0
    %94 = vmatpush.bf16.msra.mxu0 0
    %95 = vmatpush.bf16.msra.mxu0 %v83
    %96 = vmatmul.bf16.gmra.mxu0 %v86
    %v97 = vpop.f32.mrf.mxu0
    %v98 = vadd.f32 0.0, %v97
    %v99 = vpop.f32.mrf.mxu0
    %100 = vdwg.mxu0
    %v103 = vunpack.c.l.b16 %v75
    %v104 = vunpack.c.l.b16 %v76
    %v105 = vpack.c.b16 %v104, %v103
    %107 = vmatpush.bf16.msra.mxu0 0
    %108 = vmatpush.bf16.msra.mxu0 0
    %109 = vmatpush.bf16.msra.mxu0 0
    %110 = vmatpush.bf16.msra.mxu0 0
    %111 = vmatpush.bf16.msra.mxu0 0
    %112 = vmatpush.bf16.msra.mxu0 0
    %113 = vmatpush.bf16.msra.mxu0 0
    %114 = vmatpush.bf16.msra.mxu0 %v105
    %115 = vmatmul.bf16.gmra.mxu0 %v86
    %v116 = vpop.f32.mrf.mxu0
    %v117 = vadd.f32 %v98, %v116
    %v118 = vpop.f32.mrf.mxu0
    %119 = vdwg.mxu0
    %v120 = vmul.f32 %v117, %v65
    %v121 = vsel %vm53, %v120, 0.0
    %122 = vadd.xlane.f32.xlu0 %v121
    %v123 = vpop.xlane.xlu0 %122
    %v124 = vrot.slane %v123, 4
    %v125 = vadd.f32 %v123, %v124
    %v126 = vrot.slane %v125, 2
    %v127 = vadd.f32 %v125, %v126
    %v128 = vrot.slane %v127, 1
    %v129 = vadd.f32 %v127, %v128
    %v130 = vsub.f32 0.0, %v129
    %v131 = vlaneseq
    %v132 = vshrl.u32 %v131, 7
    %vm133 = vcmp.eq.s32.totalorder %v132, 0
    %vm134 = vcmp.eq.s32.totalorder %v67, 0
    %vm135 = vmand %vm133, %vm134
    %v136 = vsel %vm135, %v130, 0.0
    %p137 = scmp.eq.s32.totalorder 0, 0
    // Predicated region
    $region26: #{tpu_custom_call.1} parent=1 // pred_check
      %p138 = pneg %p137
    $region27: #{tpu_custom_call.1} parent=1 // pred_check_branch
      %140 = sbr.rel (%p138) target = $region29
    $region28: #{tpu_custom_call.1} parent=1 // pred_region
      %141 = vst [vmem:[#allocation7] sm:$0xff] 0.0
    $region29: #{tpu_custom_call.1} parent=1 // pred_fallthru
      _
    %v142 = vld [vmem:[#allocation7] sm:$0xff]
    %v143 = vadd.f32 %v142, %v136
    %144 = vst [vmem:[#allocation7] sm:$0xff] %v143
    // Predicated region
    $region30: #{tpu_custom_call.1} parent=1 // pred_check
      _
    $region31: #{tpu_custom_call.1} parent=1 // pred_check_branch
      %146 = sbr.rel (0) target = $region33
    $region32: #{tpu_custom_call.1} parent=1 // pred_region
      %148 = vsyncadd [#allocation4], 0
      %s150 = sshll.u32 [#allocation7], 4
      %s151 = int_to_ptr.vmem [resolvable:$true] %s150
      %s152 = sshll.u32 %s4, 4
      %s153 = int_to_ptr.hbm [resolvable:$true] %s152
      %155 = dma.vmem_to_hbm [thread:$0]  %s151, 128, %s153, [#allocation4]
    $region33: #{tpu_custom_call.1} parent=1 // pred_fallthru
      _
    // Predicated region
    $region34: #{tpu_custom_call.1} parent=1 // pred_check
      _
    $region35: #{tpu_custom_call.1} parent=1 // pred_check_branch
      %157 = sbr.rel (0) target = $region37
    $region36: #{tpu_custom_call.1} parent=1 // pred_region
      %159 = dma.done [#allocation4], 128
    $region37: #{tpu_custom_call.1} parent=1 // pred_fallthru
      _
    %160 = vsyncpa [#allocation3], 1
    %161 = vsyncpa [#allocation6], 1
    %162 = vsyncpa [#allocation4], 1

</llo_original>
